<compile_context>
chip_gen: v5e
topology: v5e:2x2
jax: 0.10.0
libtpu: 0.0.40
codegen_flags: <defaults>
</compile_context>

<pallas_src>
import functools

import jax
import jax.numpy as jnp
from jax import lax
from jax.experimental import pallas as pl
from jax.experimental.pallas import tpu as pltpu


def _cdiv(a, b):
    return -(-a // b)


def _round_down(a, b):
    return (a // b) * b


def _joints_loss_kernel(o_ref, t_ref, acc_ref, *, tile_b, batch,
                        steps_per_part, needs_mask):
    """Accumulate sum((o - t)^2) over one (tile_b, feat) batch tile.

    o_ref, t_ref : (tile_b, feat) input tiles (original dtype; upcast here).
    acc_ref      : (1, 8, feat) f32 output block, resident across the inner
                   (reduction) grid axis -> per-partition accumulator.
    """
    p = pl.program_id(0)
    i = pl.program_id(1)

    # Zero the accumulator at the start of each partition's reduction sweep.
    @pl.when(i == 0)
    def _():
        acc_ref[...] = jnp.zeros_like(acc_ref)

    d = o_ref[...].astype(jnp.float32) - t_ref[...].astype(jnp.float32)
    sq = d * d

    if needs_mask:
        # Ragged / over-covered last tile(s): zero out rows past the batch.
        # `start` is the UNCLAMPED row start (the index_map clamps the DMA to
        # a valid block; here we only need the logical position for masking).
        start = (p * steps_per_part + i) * tile_b
        row_ids = lax.broadcasted_iota(jnp.int32, (tile_b, 1), 0)
        sq = jnp.where(row_ids < (batch - start), sq, 0.0)

    # Group rows by 8 (one sublane group) and reduce across groups: pure VPU
    # vreg adds, no per-tile cross-lane / cross-sublane XLU traffic.
    feat = sq.shape[-1]
    part = jnp.sum(sq.reshape(tile_b // 8, 8, feat), axis=0)    # (8, feat)
    acc_ref[...] += part[None]


def joints_loss(output, target, target_mask=None, *,
                tile_rows=None, num_partitions=1, core_parallel=False,
                buffer_count=2, use_pallas=None, min_pallas_elements=262144,
                target_tile_bytes=1 << 20):
    """Equivalent of JointsLoss(criterion='L2').forward(output, target).

    loss = sum((output - target)**2) / batch_size / num_joints

    v7x tuning: joints_loss(..., num_partitions=2, core_parallel=True,
                            buffer_count=3)
    """
    assert output.shape == target.shape
    # target_mask is accepted for API parity; the reference 'L2' branch
    # ignores it.
    del target_mask

    batch = output.shape[0]
    feat = 1
    for s in output.shape[1:]:
        feat *= s
    assert feat % 3 == 0, "per-sample size must be a multiple of 3"
    num_joints = feat // 3
    inv_scale = 1.0 / (batch * num_joints)
    n = batch * feat

    def _plain():
        # Small-input / fallback path: let XLA fuse the whole thing.
        d = output.astype(jnp.float32) - target.astype(jnp.float32)
        return jnp.sum(d * d) * inv_scale

    if use_pallas is None:
        use_pallas = n >= min_pallas_elements

    itemsize = jnp.dtype(output.dtype).itemsize
    gran = {4: 8, 2: 16, 1: 32}.get(itemsize, 8)   # sublane granularity
    max_tb = _round_down(batch, gran)

    if (not use_pallas) or max_tb == 0:
        return _plain()

    # Tile size (rows of `feat` elements): aim at ~target_tile_bytes per input
    # tile; always a multiple of the sublane granularity and <= batch.
    if tile_rows is None:
        tile_rows = max(gran, target_tile_bytes // max(feat * itemsize, 1))
    tile_b = max(gran, _round_down(min(tile_rows, max_tb), gran))
    if tile_b * feat * itemsize > (16 << 20):
        # Even one 8-row tile would blow VMEM (not a joints-shaped input).
        return _plain()

    num_partitions = max(1, min(num_partitions, max(1, batch // tile_b)))
    total_blocks = _cdiv(batch, tile_b)
    steps = _cdiv(total_blocks, num_partitions)
    last_block = total_blocks - 1
    # Mask needed if the (partitions x steps x tile) coverage exceeds batch.
    needs_mask = (num_partitions * steps * tile_b) != batch

    # Free reshapes: no padding, no prefix slices, no extra HBM traffic.
    o2 = output.reshape(batch, feat)
    t2 = target.reshape(batch, feat)

    def in_index(p, i):
        # Clamp fully-out-of-range tiles (possible only when the partition
        # axis over-covers) onto the last valid block; the kernel masks them.
        return (jnp.minimum(p * steps + i, last_block), 0)

    spec_kwargs = {}
    if buffer_count != 2:
        spec_kwargs["pipeline_mode"] = pl.Buffered(buffer_count)
    in_spec = pl.BlockSpec((tile_b, feat), in_index, **spec_kwargs)

    if core_parallel:
        dim_sem = (pltpu.CORE_PARALLEL, pltpu.ARBITRARY)
    else:
        dim_sem = ("parallel", "arbitrary")

    cost = pl.CostEstimate(
        flops=3 * n,
        transcendentals=0,
        bytes_accessed=2 * n * itemsize + num_partitions * 8 * feat * 4,
    )

    partials = pl.pallas_call(
        functools.partial(_joints_loss_kernel, tile_b=tile_b, batch=batch,
                          steps_per_part=steps, needs_mask=needs_mask),
        out_shape=jax.ShapeDtypeStruct((num_partitions, 8, feat), jnp.float32),
        grid_spec=pltpu.PrefetchScalarGridSpec(
            num_scalar_prefetch=0,
            grid=(num_partitions, steps),
            in_specs=[in_spec, in_spec],
            out_specs=pl.BlockSpec((1, 8, feat), lambda p, i: (p, 0, 0)),
        ),
        compiler_params=pltpu.CompilerParams(dimension_semantics=dim_sem),
        cost_estimate=cost,
    )(o2, t2)

    # One tiny cross-lane reduction of the (P, 8, feat) partials + scaling.
    return jnp.sum(partials) * inv_scale


if __name__ == "__main__":
    key = jax.random.PRNGKey(0)
    k1, k2, k3, k4, k5, k6 = jax.random.split(key, 6)

    def ref_loss(o, t):
        b = o.shape[0]
        o3 = o.reshape(b, -1, 3).astype(jnp.float32)
        t3 = t.reshape(b, -1, 3).astype(jnp.float32)
        return jnp.sum((o3 - t3) ** 2) / b / o3.shape[1]

    # Case 1: canonical tiny pose input (B=2, 8 joints x 3) -> plain-JAX
    # bypass path (no kernel launch; launch overhead would dominate).
    out1 = jax.random.normal(k1, (2, 8, 3), dtype=jnp.float32)
    tgt1 = jax.random.normal(k2, (2, 8, 3), dtype=jnp.float32)
    loss1 = joints_loss(out1, tgt1)
    jax.block_until_ready(loss1)
    assert jnp.allclose(loss1, ref_loss(out1, tgt1), rtol=1e-5, atol=1e-5), (
        loss1, ref_loss(out1, tgt1))

    # Case 2: forced Pallas path, multi-step reduction with a ragged last
    # tile (batch 50 not a multiple of the 16-row tile -> in-kernel masking).
    out2 = jax.random.normal(k3, (50, 96, 3), dtype=jnp.float32)
    tgt2 = jax.random.normal(k4, (50, 96, 3), dtype=jnp.float32)
    loss2 = joints_loss(out2, tgt2, use_pallas=True, tile_rows=16)
    jax.block_until_ready(loss2)
    assert jnp.allclose(loss2, ref_loss(out2, tgt2), rtol=1e-5, atol=1e-5), (
        loss2, ref_loss(out2, tgt2))

    # Case 3: forced Pallas with 2 partitions (exercises the clamped
    # index_map + fully-masked tile on the over-covering second partition).
    out3 = jax.random.normal(k5, (40, 17 * 3), dtype=jnp.float32)
    tgt3 = jax.random.normal(k6, (40, 17 * 3), dtype=jnp.float32)
    loss3 = joints_loss(out3, tgt3, use_pallas=True, tile_rows=16,
                        num_partitions=2)
    jax.block_until_ready(loss3)
    assert jnp.allclose(loss3, ref_loss(out3, tgt3), rtol=1e-5, atol=1e-5), (
        loss3, ref_loss(out3, tgt3))

    # Case 4: forced Pallas with the default auto tile size (single step).
    out4 = jax.random.normal(k1, (64, 96 * 3), dtype=jnp.float32)
    tgt4 = jax.random.normal(k2, (64, 96 * 3), dtype=jnp.float32)
    loss4 = joints_loss(out4, tgt4, use_pallas=True)
    jax.block_until_ready(loss4)
    assert jnp.allclose(loss4, ref_loss(out4, tgt4), rtol=1e-5, atol=1e-5), (
        loss4, ref_loss(out4, tgt4))

    print("KERNEL_OK")
</pallas_src>

<mosaic_0001>
module attributes {stable_mosaic.version = 11 : i64} {
  func.func @_joints_loss_kernel(%arg0: i32, %arg1: i32, %arg2: memref<16x288xf32, #tpu.memory_space<vmem>>, %arg3: memref<16x288xf32, #tpu.memory_space<vmem>>, %arg4: memref<1x8x288xf32, #tpu.memory_space<vmem>>) attributes {dimension_semantics = [#tpu.dimension_semantics<parallel>, #tpu.dimension_semantics<arbitrary>], iteration_bounds = array<i64: 1, 4>, scalar_prefetch = 0 : i64, scratch_operands = 0 : i64, tpu.core_type = #tpu.core_type<tc>, window_params = [{transform_indices = @transform_0, window_bounds = array<i64: 16, 288>}, {transform_indices = @transform_1, window_bounds = array<i64: 16, 288>}, {transform_indices = @transform_2, window_bounds = array<i64: 1, 8, 288>}]} {
    %c0_i32 = arith.constant 0 : i32
    %0 = arith.cmpi eq, %arg1, %c0_i32 : i32
    %1 = arith.extui %0 : i1 to i32
    %c0_i32_0 = arith.constant 0 : i32
    %2 = arith.cmpi ne, %1, %c0_i32_0 : i32
    scf.if %2 {
      %cst_11 = arith.constant 0.000000e+00 : f32
      %24 = vector.broadcast %cst_11 : f32 to vector<1x8x288xf32>
      %c0_12 = arith.constant 0 : index
      %c0_13 = arith.constant 0 : index
      %c0_14 = arith.constant 0 : index
      %25 = vector.load %arg4[%c0_12, %c0_13, %c0_14] : memref<1x8x288xf32, #tpu.memory_space<vmem>>, vector<1x8x288xf32>
      tpu.vector_store %arg4[%c0_12, %c0_13, %c0_14], %24 {strides = array<i32>} : memref<1x8x288xf32, #tpu.memory_space<vmem>>, vector<1x8x288xf32>,
    } else {
    }
    %c0 = arith.constant 0 : index
    %c0_1 = arith.constant 0 : index
    %3 = vector.load %arg2[%c0, %c0_1] : memref<16x288xf32, #tpu.memory_space<vmem>>, vector<16x288xf32>
    %c0_2 = arith.constant 0 : index
    %c0_3 = arith.constant 0 : index
    %4 = vector.load %arg3[%c0_2, %c0_3] : memref<16x288xf32, #tpu.memory_space<vmem>>, vector<16x288xf32>
    %5 = arith.subf %3, %4 : vector<16x288xf32>
    %6 = arith.mulf %5, %5 : vector<16x288xf32>
    %c4_i32 = arith.constant 4 : i32
    %7 = arith.muli %arg0, %c4_i32 : i32
    %8 = arith.addi %7, %arg1 : i32
    %c16_i32 = arith.constant 16 : i32
    %9 = arith.muli %8, %c16_i32 : i32
    %10 = tpu.iota {dimensions = array<i32: 0>} : vector<16x1xi32>
    %c50_i32 = arith.constant 50 : i32
    %11 = arith.subi %c50_i32, %9 : i32
    %12 = vector.broadcast %11 : i32 to vector<16x1xi32>
    %13 = arith.cmpi slt, %10, %12 : vector<16x1xi32>
    %cst = arith.constant 0.000000e+00 : f32
    %14 = vector.shape_cast %13 : vector<16x1xi1> to vector<16x1xi1>
    %15 = vector.broadcast %14 : vector<16x1xi1> to vector<16x288xi1>
    %16 = vector.broadcast %cst : f32 to vector<16x288xf32>
    %17 = arith.select %15, %6, %16 : vector<16x288xi1>, vector<16x288xf32>
    %18 = vector.shape_cast %17 : vector<16x288xf32> to vector<2x8x288xf32>
    %cst_4 = arith.constant dense<0.000000e+00> : vector<8x288xf32>
    %19 = vector.multi_reduction <add>, %18, %cst_4 [0] : vector<2x8x288xf32> to vector<8x288xf32>
    %c0_5 = arith.constant 0 : index
    %c0_6 = arith.constant 0 : index
    %c0_7 = arith.constant 0 : index
    %20 = vector.load %arg4[%c0_5, %c0_6, %c0_7] : memref<1x8x288xf32, #tpu.memory_space<vmem>>, vector<1x8x288xf32>
    %21 = vector.shape_cast %19 : vector<8x288xf32> to vector<1x8x288xf32>
    %22 = arith.addf %20, %21 : vector<1x8x288xf32>
    %c0_8 = arith.constant 0 : index
    %c0_9 = arith.constant 0 : index
    %c0_10 = arith.constant 0 : index
    %23 = vector.load %arg4[%c0_8, %c0_9, %c0_10] : memref<1x8x288xf32, #tpu.memory_space<vmem>>, vector<1x8x288xf32>
    tpu.vector_store %arg4[%c0_8, %c0_9, %c0_10], %22 {strides = array<i32>} : memref<1x8x288xf32, #tpu.memory_space<vmem>>, vector<1x8x288xf32>,
    return
  }
  func.func @transform_0(%arg0: i32, %arg1: i32) -> (i32, i32) {
    %c4_i32 = arith.constant 4 : i32
    %0 = arith.muli %arg0, %c4_i32 : i32
    %1 = arith.addi %0, %arg1 : i32
    %c3_i32 = arith.constant 3 : i32
    %2 = arith.minsi %1, %c3_i32 : i32
    %c0_i32 = arith.constant 0 : i32
    %c0_i32_0 = arith.constant 0 : i32
    return %2, %c0_i32 : i32, i32
  }
  func.func @transform_1(%arg0: i32, %arg1: i32) -> (i32, i32) {
    %c4_i32 = arith.constant 4 : i32
    %0 = arith.muli %arg0, %c4_i32 : i32
    %1 = arith.addi %0, %arg1 : i32
    %c3_i32 = arith.constant 3 : i32
    %2 = arith.minsi %1, %c3_i32 : i32
    %c0_i32 = arith.constant 0 : i32
    %c0_i32_0 = arith.constant 0 : i32
    return %2, %c0_i32 : i32, i32
  }
  func.func @transform_2(%arg0: i32, %arg1: i32) -> (i32, i32, i32) {
    %c0_i32 = arith.constant 0 : i32
    %c0_i32_0 = arith.constant 0 : i32
    %c0_i32_1 = arith.constant 0 : i32
    return %arg0, %c0_i32, %c0_i32_0 : i32, i32, i32
  }
}

</mosaic_0001>

<llo_original>
// kernel: tpu_custom_call.1
$region0: #{tpu_custom_call.1}
  #allocation0 [shape = 'u32[]', space=smem, size = 0x4, offset = 0x4, fixed_abs, tag = 'smem constant byte address 0x4 - core index']
  #allocation1 [shape = 'u32[72,128]{1,0:T(1,128)}', space=vmem, size = 0x9000, scoped, tag = 'internal scratch']
  %s0 = inlined_call_operand.hbm [shape: f32[50,288], index: 0, kind: input, shape index: {}]
  %s1 = inlined_call_operand.hbm [shape: f32[50,288], index: 1, kind: input, shape index: {}]
  %s2 = inlined_call_operand.hbm [shape: f32[1,8,288], index: 2, kind: output, shape index: {}]
  %s3 = sld [smem:[#allocation0]]
  $region53: #{tpu_custom_call.1} parent=0
    _
  %s5 = ssub.s32 1, %s3
  %s6 = scalar_select 0, %s5, %s3
  $region1: #{tpu_custom_call.1} parent=0
    #allocation2 [shape = 'u8[49152]{0}', space=vmem, size = 0xc000, scoped, tag = 'input window, operand 0']
    #allocation3 [shape = 's32[2]{0}', space=sflag, size = 0x8, scoped, tag = 'scoped memory for tpu_custom_call.1']
    #allocation4 [shape = 's32[2]{0}', space=sflag, size = 0x8, scoped, tag = 'scoped memory for tpu_custom_call.1']
    #allocation5 [shape = 'u8[49152]{0}', space=vmem, size = 0xc000, scoped, tag = 'input window, operand 1']
    #allocation6 [shape = 's32[2]{0}', space=sflag, size = 0x8, scoped, tag = 'scoped memory for tpu_custom_call.1']
    #allocation7 [shape = 'u8[12288]{0}', space=vmem, size = 0x3000, scoped, tag = 'output window, operand 0, single buffered']
    %7 = vsyncpa [#allocation3], 0
    %s8 = scalar_lea.sflag [#allocation3], 1
    %9 = vsyncpa %s8, 0
    %10 = vsyncpa [#allocation6], 0
    %s11 = scalar_lea.sflag [#allocation6], 1
    %12 = vsyncpa %s11, 0
    %13 = vsyncpa [#allocation4], 0
    loop: start=0, step=1, limit=6
    $region2: #{tpu_custom_call.1} parent=1 // loop_pre_header
      _
    $region3: #{tpu_custom_call.1} parent=1 // loop_header
      %s15 = sphi 0, %s19
      %p16 = scmp.ge.s32.totalorder %s15, 6
      %s22 = sphi 0, %s34
      %s23 = sphi 0, %s30
      %s24 = sphi 0, %s22
      %s25 = sphi 0, %s23
      %s26 = sphi 0, %s24
      %s27 = sphi 0, %s25
      %s45 = sphi 0, %s47
      %s48 = sphi 0, %s45
      %s49 = sphi 0, %s48
      %s65 = sphi 0, %s49
      %s79 = sphi 0, %s81
      %s82 = sphi 0, %s79
      %s83 = sphi 0, %s82
      %s99 = sphi 0, %s83
      %s105 = sphi 0, %s107
      %s108 = sphi 0, %s105
      %s109 = sphi 0, %s108
      %s125 = sphi 0, %s109
    $region4: #{tpu_custom_call.1} parent=1 // loop_header_branch
      %18 = sbr.rel (%p16) target = $region8
    $region5: #{tpu_custom_call.1} parent=1 // loop_body
      %s20 = ssub.s32 %s15, 1
      %s21 = ssub.s32 %s15, 2
      %s28 = sadd.s32 1, %s23
      %p29 = scmp.ge.s32.totalorder %s28, 4
      %s30 = scalar_select %p29, 0, %s28
      %s31 = sadd.s32 1, %s22
      %s32 = scalar_select %p29, %s31, %s22
      %p33 = scmp.ge.s32.totalorder %s32, 1
      %s34 = scalar_select %p33, 0, %s32
      %s35 = smul.u32 %s22, 4
      %s36 = sadd.s32 %s35, %s23
      %p37 = scmp.lt.s32.totalorder %s36, 3
      %s38 = scalar_select %p37, %s36, 3
      %s39 = smul.u32 %s34, 4
      %s40 = sadd.s32 %s39, %s30
      %p41 = scmp.lt.s32.totalorder %s40, 3
      %s42 = scalar_select %p41, %s40, 3
      %s43 = ssub.s32 %s38, %s42
      %p44 = scmp.eq.s32.totalorder %s43, 0
      %s46 = sadd.s32 %s45, 1
      %s47 = scalar_select %p44, %s45, %s46
      %p50 = pneg %p44
      %p51 = scmp.eq.s32.totalorder %s15, 3
      %p52 = por %p50, %p51
      %p53 = scmp.ne.s32.totalorder %s45, %s48
      %p54 = scmp.eq.s32.totalorder %s15, 0
      %p55 = por %p53, %p54
      %p56 = scmp.ne.s32.totalorder %s45, %s48
      %p57 = scmp.eq.s32.totalorder %s20, 3
      %p58 = por %p56, %p57
      %p59 = scmp.ne.s32.totalorder %s48, %s49
      %p60 = scmp.eq.s32.totalorder %s20, 0
      %p61 = por %p59, %p60
      %p62 = scmp.ne.s32.totalorder %s48, %s49
      %p63 = scmp.eq.s32.totalorder %s21, 3
      %p64 = por %p62, %p63
      %p66 = scmp.ne.s32.totalorder %s49, %s65
      %p67 = scmp.eq.s32.totalorder %s21, 0
      %p68 = por %p66, %p67
      %s69 = smul.u32 %s22, 4
      %s70 = sadd.s32 %s69, %s23
      %p71 = scmp.lt.s32.totalorder %s70, 3
      %s72 = scalar_select %p71, %s70, 3
      %s73 = smul.u32 %s34, 4
      %s74 = sadd.s32 %s73, %s30
      %p75 = scmp.lt.s32.totalorder %s74, 3
      %s76 = scalar_select %p75, %s74, 3
      %s77 = ssub.s32 %s72, %s76
      %p78 = scmp.eq.s32.totalorder %s77, 0
      %s80 = sadd.s32 %s79, 1
      %s81 = scalar_select %p78, %s79, %s80
      %p84 = pneg %p78
      %p85 = scmp.eq.s32.totalorder %s15, 3
      %p86 = por %p84, %p85
      %p87 = scmp.ne.s32.totalorder %s79, %s82
      %p88 = scmp.eq.s32.totalorder %s15, 0
      %p89 = por %p87, %p88
      %p90 = scmp.ne.s32.totalorder %s79, %s82
      %p91 = scmp.eq.s32.totalorder %s20, 3
      %p92 = por %p90, %p91
      %p93 = scmp.ne.s32.totalorder %s82, %s83
      %p94 = scmp.eq.s32.totalorder %s20, 0
      %p95 = por %p93, %p94
      %p96 = scmp.ne.s32.totalorder %s82, %s83
      %p97 = scmp.eq.s32.totalorder %s21, 3
      %p98 = por %p96, %p97
      %p100 = scmp.ne.s32.totalorder %s83, %s99
      %p101 = scmp.eq.s32.totalorder %s21, 0
      %p102 = por %p100, %p101
      %s103 = ssub.s32 %s22, %s34
      %p104 = scmp.eq.s32.totalorder %s103, 0
      %s106 = sadd.s32 %s105, 1
      %s107 = scalar_select %p104, %s105, %s106
      %p110 = pneg %p104
      %p111 = scmp.eq.s32.totalorder %s15, 3
      %p112 = por %p110, %p111
      %p113 = scmp.ne.s32.totalorder %s105, %s108
      %p114 = scmp.eq.s32.totalorder %s15, 0
      %p115 = por %p113, %p114
      %p116 = scmp.ne.s32.totalorder %s105, %s108
      %p117 = scmp.eq.s32.totalorder %s20, 3
      %p118 = por %p116, %p117
      %p119 = scmp.ne.s32.totalorder %s108, %s109
      %p120 = scmp.eq.s32.totalorder %s20, 0
      %p121 = por %p119, %p120
      %p122 = scmp.ne.s32.totalorder %s108, %s109
      %p123 = scmp.eq.s32.totalorder %s21, 3
      %p124 = por %p122, %p123
      %p126 = scmp.ne.s32.totalorder %s109, %s125
      %p127 = scmp.eq.s32.totalorder %s21, 0
      %p128 = por %p126, %p127
      %p129 = scmp.le.s32.totalorder 1, %s15
      %p130 = scmp.lt.s32.totalorder %s15, 5
      %p131 = pnand %p129, %p130
      %p132 = pneg %p131
      // Predicated region
      $region9: #{tpu_custom_call.1} parent=5 // pred_check
        _
      $region10: #{tpu_custom_call.1} parent=5 // pred_check_branch
        %134 = sbr.rel (%p131) target = $region12
      $region11: #{tpu_custom_call.1} parent=5 // pred_region
        %s135 = ssub.s32 %s15, 1
      $region12: #{tpu_custom_call.1} parent=5 // pred_fallthru
        _
      %p136 = scmp.lt.s32.totalorder %s15, 4
      // Predicated region
      $region13: #{tpu_custom_call.1} parent=5 // pred_check
        %p137 = pneg %p136
      $region14: #{tpu_custom_call.1} parent=5 // pred_check_branch
        %139 = sbr.rel (%p137) target = $region16
      $region15: #{tpu_custom_call.1} parent=5 // pred_region
        // Predicated region
        $region17: #{tpu_custom_call.1} parent=15 // pred_check
          %p140 = pneg %p55
        $region18: #{tpu_custom_call.1} parent=15 // pred_check_branch
          %142 = sbr.rel (%p140) target = $region20
        $region19: #{tpu_custom_call.1} parent=15 // pred_region
          %s143 = sand.u32 %s45, 1
          %s144 = scalar_lea.sflag [#allocation3], %s143
          %s145 = sand.u32 %s45, 1
          %s146 = smul.addr %s145, 48
          %s147 = scalar_lea.vmem [#allocation2], %s146
          %s148 = smul.u32 %s22, 4
          %s149 = sadd.s32 %s148, %s23
          %p150 = scmp.lt.s32.totalorder %s149, 3
          %s151 = scalar_select %p150, %s149, 3
          %s152 = smul.u32 2, %s151
          %s153 = ssub.s32 7, %s152
          %p154 = scmp.lt.s32.totalorder %s153, 2
          %s155 = scalar_select %p154, %s153, 2
          %s156 = smul.u32 8, %s155
          %s157 = smul.u32 %s156, 3
          %s158 = ssub.s32 48, %s157
          %s159 = sshll.u32 %s158, 4
          %160 = vsyncadd %s144, %s159
          %p161 = scmp.ne.s32.totalorder 0, %s157
          %s162 = smul.addr %s152, 3
          %s163 = smul.addr %s162, 8
          %s164 = scalar_lea.hbm %s0, %s163
          %s165 = smul.u32 24, %s155
          %s166 = sshll.u32 %s164, 4
          %s167 = int_to_ptr.hbm [resolvable:$true] %s166
          %s168 = sshll.u32 %s147, 4
          %s169 = int_to_ptr.vmem [resolvable:$true] %s168
          %s170 = sshll.u32 %s165, 4
          %174 = dma.hbm_to_vmem [thread:$0]  (%p161), %s167, %s170, %s169, %s144, 384, 384, 24
        $region20: #{tpu_custom_call.1} parent=15 // pred_fallthru
          _
        // Predicated region
        $region21: #{tpu_custom_call.1} parent=15 // pred_check
          %p175 = pneg %p89
        $region22: #{tpu_custom_call.1} parent=15 // pred_check_branch
          %177 = sbr.rel (%p175) target = $region24
        $region23: #{tpu_custom_call.1} parent=15 // pred_region
          %s178 = sand.u32 %s79, 1
          %s179 = scalar_lea.sflag [#allocation6], %s178
          %s180 = sand.u32 %s79, 1
          %s181 = smul.addr %s180, 48
          %s182 = scalar_lea.vmem [#allocation5], %s181
          %s183 = smul.u32 %s22, 4
          %s184 = sadd.s32 %s183, %s23
          %p185 = scmp.lt.s32.totalorder %s184, 3
          %s186 = scalar_select %p185, %s184, 3
          %s187 = smul.u32 2, %s186
          %s188 = ssub.s32 7, %s187
          %p189 = scmp.lt.s32.totalorder %s188, 2
          %s190 = scalar_select %p189, %s188, 2
          %s191 = smul.u32 8, %s190
          %s192 = smul.u32 %s191, 3
          %s193 = ssub.s32 48, %s192
          %s194 = sshll.u32 %s193, 4
          %195 = vsyncadd %s179, %s194
          %p196 = scmp.ne.s32.totalorder 0, %s192
          %s197 = smul.addr %s187, 3
          %s198 = smul.addr %s197, 8
          %s199 = scalar_lea.hbm %s1, %s198
          %s200 = smul.u32 24, %s190
          %s201 = sshll.u32 %s199, 4
          %s202 = int_to_ptr.hbm [resolvable:$true] %s201
          %s203 = sshll.u32 %s182, 4
          %s204 = int_to_ptr.vmem [resolvable:$true] %s203
          %s205 = sshll.u32 %s200, 4
          %209 = dma.hbm_to_vmem [thread:$0]  (%p196), %s202, %s205, %s204, %s179, 384, 384, 24
        $region24: #{tpu_custom_call.1} parent=15 // pred_fallthru
          _
      $region16: #{tpu_custom_call.1} parent=5 // pred_fallthru
        _
      %p210 = scmp.le.s32.totalorder 1, %s15
      %p211 = scmp.lt.s32.totalorder %s15, 5
      %p212 = pnand %p210, %p211
      %p213 = pneg %p212
      // Predicated region
      $region25: #{tpu_custom_call.1} parent=5 // pred_check
        _
      $region26: #{tpu_custom_call.1} parent=5 // pred_check_branch
        %215 = sbr.rel (%p212) target = $region28
      $region27: #{tpu_custom_call.1} parent=5 // pred_region
        %s216 = ssub.s32 %s15, 1
        %s217 = sand.u32 %s48, 1
        %s218 = scalar_lea.sflag [#allocation3], %s217
        %s219 = sand.u32 %s48, 1
        %s220 = smul.addr %s219, 48
        %s221 = scalar_lea.vmem [#allocation2], %s220
        // Predicated region
        $region29: #{tpu_custom_call.1} parent=27 // pred_check
          %p222 = pneg %p61
        $region30: #{tpu_custom_call.1} parent=27 // pred_check_branch
          %224 = sbr.rel (%p222) target = $region32
        $region31: #{tpu_custom_call.1} parent=27 // pred_region
          %226 = dma.done %s218, 768
        $region32: #{tpu_custom_call.1} parent=27 // pred_fallthru
          _
        %s227 = sand.u32 %s82, 1
        %s228 = scalar_lea.sflag [#allocation6], %s227
        %s229 = sand.u32 %s82, 1
        %s230 = smul.addr %s229, 48
        %s231 = scalar_lea.vmem [#allocation5], %s230
        // Predicated region
        $region33: #{tpu_custom_call.1} parent=27 // pred_check
          %p232 = pneg %p95
        $region34: #{tpu_custom_call.1} parent=27 // pred_check_branch
          %234 = sbr.rel (%p232) target = $region36
        $region35: #{tpu_custom_call.1} parent=27 // pred_region
          %236 = dma.done %s228, 768
        $region36: #{tpu_custom_call.1} parent=27 // pred_fallthru
          _
        %s237 = sand.u32 %s48, 1
        %s238 = scalar_lea.sflag [#allocation3], %s237
        %s239 = sand.u32 %s48, 1
        %s240 = smul.addr %s239, 48
        %s241 = scalar_lea.vmem [#allocation2], %s240
        %p242 = pneg %p61
        %p243 = pneg %p58
        %s244 = sand.u32 %s82, 1
        %s245 = scalar_lea.sflag [#allocation6], %s244
        %s246 = sand.u32 %s82, 1
        %s247 = smul.addr %s246, 48
        %s248 = scalar_lea.vmem [#allocation5], %s247
        %p249 = pneg %p95
        %p250 = pneg %p92
        %p251 = pneg %p121
        %p252 = pneg %p118
        %s253 = smul.u32 %s24, 4
        %s254 = sadd.s32 %s253, %s25
        %p255 = scmp.lt.s32.totalorder %s254, 3
        %s256 = scalar_select %p255, %s254, 3
        %s257 = smul.u32 2, %s256
        %s258 = ssub.s32 7, %s257
        %p259 = scmp.lt.s32.totalorder %s258, 2
        %s260 = scalar_select %p259, %s258, 2
        %s261 = smul.u32 8, %s260
        %s262 = smul.u32 %s261, 3
        %s263 = smul.u32 %s24, 4
        %s264 = sadd.s32 %s263, %s25
        %p265 = scmp.lt.s32.totalorder %s264, 3
        %s266 = scalar_select %p265, %s264, 3
        %s267 = smul.u32 2, %s266
        %s268 = ssub.s32 7, %s267
        %p269 = scmp.lt.s32.totalorder %s268, 2
        %s270 = scalar_select %p269, %s268, 2
        %s271 = smul.u32 8, %s270
        %s272 = smul.u32 %s271, 3
        %p273 = scmp.eq.s32.totalorder %s25, 0
        // Predicated region
        $region37: #{tpu_custom_call.1} parent=27 // pred_check
          %p274 = pneg %p273
        $region38: #{tpu_custom_call.1} parent=27 // pred_check_branch
          %276 = sbr.rel (%p274) target = $region40
        $region39: #{tpu_custom_call.1} parent=27 // pred_region
          %277 = vst [vmem:[#allocation7] sm:$0xff] 0.0
          %278 = vst [vmem:[#allocation7 + $0x8] sm:$0xff] 0.0
          %vm279 = vcmask 261120
          %280 = vst.msk [vmem:[#allocation7 + $0x10] sm:$0xff] %vm279, 0.0
        $region40: #{tpu_custom_call.1} parent=27 // pred_fallthru
          _
        %v281 = vld [vmem:[%s221] sm:$0xff]
        %v282 = vld [vmem:[%s221 + $0x8] sm:$0xff]
        %v283 = vld [vmem:[%s221 + $0x10] sm:$0xff]
        %v284 = vld [vmem:[%s221 + $0x18] sm:$0xff]
        %v285 = vld [vmem:[%s221 + $0x20] sm:$0xff]
        %v286 = vld [vmem:[%s221 + $0x28] sm:$0xff]
        %v287 = vld [vmem:[%s231] sm:$0xff]
        %v288 = vld [vmem:[%s231 + $0x8] sm:$0xff]
        %v289 = vld [vmem:[%s231 + $0x10] sm:$0xff]
        %v290 = vld [vmem:[%s231 + $0x18] sm:$0xff]
        %v291 = vld [vmem:[%s231 + $0x20] sm:$0xff]
        %v292 = vld [vmem:[%s231 + $0x28] sm:$0xff]
        %v293 = vsub.f32 %v281, %v287
        %v294 = vsub.f32 %v282, %v288
        %v295 = vsub.f32 %v283, %v289
        %v296 = vsub.f32 %v284, %v290
        %v297 = vsub.f32 %v285, %v291
        %v298 = vsub.f32 %v286, %v292
        %v299 = vmul.f32 %v293, %v293
        %v300 = vmul.f32 %v294, %v294
        %v301 = vmul.f32 %v295, %v295
        %v302 = vmul.f32 %v296, %v296
        %v303 = vmul.f32 %v297, %v297
        %v304 = vmul.f32 %v298, %v298
        %s305 = smul.u32 %s24, 4
        %s306 = sadd.s32 %s305, %s25
        %s307 = smul.u32 %s306, 16
        %v308 = vlaneseq
        %v309 = vshrl.u32 %v308, 7
        %v310 = vadd.s32 %v309, 8
        %s311 = ssub.s32 50, %s307
        %v312 = vstv %s311
        %vm313 = vcmp.lt.s32.totalorder %v309, %v312
        %vm314 = vcmp.lt.s32.totalorder %v310, %v312
        %v315 = vsel %vm313, 1, 0
        %v316 = vsel %vm314, 1, 0
        %vm317 = vcmp.eq.s32.totalorder %v315, 1
        %vm318 = vcmp.eq.s32.totalorder %v316, 1
        %v319 = vsel %vm317, %v299, 0.0
        %v320 = vsel %vm317, %v300, 0.0
        %v321 = vsel %vm317, %v301, 0.0
        %v322 = vsel %vm318, %v302, 0.0
        %v323 = vsel %vm318, %v303, 0.0
        %v324 = vsel %vm318, %v304, 0.0
        %v325 = vadd.f32 %v319, %v322
        %v326 = vadd.f32 %v320, %v323
        %vm327 = vcmask 261120
        %v328 = vsel %vm327, %v321, 0.0
        %v329 = vsel %vm327, %v324, 0.0
        %v330 = vadd.f32 %v328, %v329
        %v331 = vld [vmem:[#allocation7] sm:$0xff]
        %v332 = vld [vmem:[#allocation7 + $0x8] sm:$0xff]
        %v333 = vld [vmem:[#allocation7 + $0x10] sm:$0xff]
        %v334 = vadd.f32 %v331, %v325
        %v335 = vadd.f32 %v332, %v326
        %v336 = vadd.f32 %v333, %v330
        %337 = vst [vmem:[#allocation7] sm:$0xff] %v334
        %338 = vst [vmem:[#allocation7 + $0x8] sm:$0xff] %v335
        %339 = vst.msk [vmem:[#allocation7 + $0x10] sm:$0xff] %vm327, %v336
        // Predicated region
        $region41: #{tpu_custom_call.1} parent=27 // pred_check
          %p340 = pneg %p118
        $region42: #{tpu_custom_call.1} parent=27 // pred_check_branch
          %342 = sbr.rel (%p340) target = $region44
        $region43: #{tpu_custom_call.1} parent=27 // pred_region
          %344 = vsyncadd [#allocation4], 0
          %s345 = smul.addr %s24, 3
          %s346 = smul.addr %s345, 8
          %s347 = scalar_lea.hbm %s2, %s346
          %s349 = sshll.u32 [#allocation7], 4
          %s350 = int_to_ptr.vmem [resolvable:$true] %s349
          %s351 = sshll.u32 %s347, 4
          %s352 = int_to_ptr.hbm [resolvable:$true] %s351
          %354 = dma.vmem_to_hbm [thread:$0]  %s350, 384, %s352, [#allocation4]
        $region44: #{tpu_custom_call.1} parent=27 // pred_fallthru
          _
        // Predicated region
        $region45: #{tpu_custom_call.1} parent=27 // pred_check
          %p355 = pneg %p118
        $region46: #{tpu_custom_call.1} parent=27 // pred_check_branch
          %357 = sbr.rel (%p355) target = $region48
        $region47: #{tpu_custom_call.1} parent=27 // pred_region
          %359 = dma.done [#allocation4], 384
        $region48: #{tpu_custom_call.1} parent=27 // pred_fallthru
          _
      $region28: #{tpu_custom_call.1} parent=5 // pred_fallthru
        _
      %p360 = scmp.le.s32.totalorder 2, %s15
      // Predicated region
      $region49: #{tpu_custom_call.1} parent=5 // pred_check
        %p361 = pneg %p360
      $region50: #{tpu_custom_call.1} parent=5 // pred_check_branch
        %363 = sbr.rel (%p361) target = $region52
      $region51: #{tpu_custom_call.1} parent=5 // pred_region
        %s364 = ssub.s32 %s15, 2
      $region52: #{tpu_custom_call.1} parent=5 // pred_fallthru
        _
    $region6: #{tpu_custom_call.1} parent=1 // loop_footer
      %s19 = sadd.s32 1, %s15
    $region7: #{tpu_custom_call.1} parent=1 // loop_footer_branch
      %14 = sbr.rel target = $region3
    $region8: #{tpu_custom_call.1} parent=1 // loop_exit
      _
    %365 = vsyncpa [#allocation3], 1
    %s366 = scalar_lea.sflag [#allocation3], 1
    %367 = vsyncpa %s366, 1
    %368 = vsyncpa [#allocation6], 1
    %s369 = scalar_lea.sflag [#allocation6], 1
    %370 = vsyncpa %s369, 1
    %371 = vsyncpa [#allocation4], 1
    %s372 = scalar_lea.sflag [#allocation4], 1
    %373 = vsyncpa %s372, 1

</llo_original>
